<compile_context>
chip_gen: v6e
topology: v6e:2x2x1
jax: 0.10.0
libtpu: 0.0.40
codegen_flags: <defaults>
</compile_context>

<pallas_src>
import functools

import jax
import jax.numpy as jnp
import numpy as np
from jax.experimental import pallas as pl
from jax.experimental.pallas import tpu as pltpu


def _round_up(x, m):
    return ((x + m - 1) // m) * m


def _cdiv(a, b):
    return -(-a // b)


# -----------------------------------------------------------------------------
# Kernel: full depth-`depth` MLP; one grid step = one packed batch tile.
# -----------------------------------------------------------------------------
def _odefunc_kernel(t_ref, x_ref, wx_ref, wt_ref, b0_ref, wh_ref, bh_ref,
                    wo_ref, bo_ref, o_ref, *, n_mid):
    t = t_ref[0, 0]

    # Layer 0 with the torch.cat time column folded in:
    #   x @ Wx + (b0 + t*wt)   -- the time/bias row is formed once per tile.
    row0 = b0_ref[...] + t * wt_ref[...]                          # (1, GW) f32
    h = jnp.tanh(
        jnp.dot(x_ref[...].astype(wx_ref.dtype), wx_ref[...],
                preferred_element_type=jnp.float32) + row0)

    # Middle width->width layers (static unroll; depth is a Python constant).
    for i in range(n_mid):
        h = jnp.tanh(
            jnp.dot(h.astype(wh_ref.dtype), wh_ref[i],
                    preferred_element_type=jnp.float32) + bh_ref[i])

    # Final layer, no tanh.
    o_ref[...] = (
        jnp.dot(h.astype(wo_ref.dtype), wo_ref[...],
                preferred_element_type=jnp.float32) + bo_ref[...])


# -----------------------------------------------------------------------------
# Parameter packing (run ONCE, outside the ODE loop): block-diagonal lane
# packing of `pack` samples per lane group; weights stored in bf16 for
# single-pass MXU matmuls, biases kept f32.
# -----------------------------------------------------------------------------
def pack_params(params, x_dim, pack=4, compute_dtype=jnp.bfloat16):
    (w0, b0) = params[0]          # (x_dim+1, width), (width,)
    mids = params[1:-1]           # list of ((width,width), (width,))
    (wo, bo) = params[-1]         # (width, out_dim), (out_dim,)

    width = w0.shape[1]
    out_dim = wo.shape[1]
    n_mid = len(mids)
    assert n_mid >= 1, "depth must be >= 3"

    def block_diag(w, rows, cols):
        m = jnp.zeros((pack * rows, pack * cols), jnp.float32)
        for p in range(pack):
            m = m.at[p * rows:(p + 1) * rows, p * cols:(p + 1) * cols].set(w)
        return m

    # Layer 0: spatial part block-diag, time row / bias tiled along lanes.
    wx = block_diag(w0[:x_dim], x_dim, width).astype(compute_dtype)      # (GD, GW)
    wt = jnp.tile(w0[x_dim:x_dim + 1, :], (1, pack)).astype(jnp.float32) # (1, GW)
    b0p = jnp.tile(b0[None, :], (1, pack)).astype(jnp.float32)           # (1, GW)

    # Hidden layers stacked so the kernel takes a fixed number of refs.
    wh = jnp.stack([block_diag(w, width, width) for (w, _) in mids]
                   ).astype(compute_dtype)                                # (n_mid, GW, GW)
    bh = jnp.stack([jnp.tile(b[None, :], (1, pack)) for (_, b) in mids]
                   ).astype(jnp.float32)                                  # (n_mid, 1, GW)

    wop = block_diag(wo, width, out_dim).astype(compute_dtype)            # (GW, GO)
    bop = jnp.tile(bo[None, :], (1, pack)).astype(jnp.float32)            # (1, GO)

    packed = (wx, wt, b0p, wh, bh, wop, bop)
    dims = (x_dim, out_dim, width, pack, n_mid)   # static, hashable
    return packed, dims


# -----------------------------------------------------------------------------
# Wrapper: pack samples into lane groups, run the fused kernel, unpack output.
# -----------------------------------------------------------------------------
@functools.partial(jax.jit, static_argnames=("dims",))
def odefunc_forward(t, x, packed, dims):
    wx, wt, b0p, wh, bh, wop, bop = packed
    x_dim, out_dim, width, pack, n_mid = dims
    GD, GW, GO = pack * x_dim, pack * width, pack * out_dim
    B = x.shape[0]

    # Rows after pack-way sample packing, sublane aligned; pick a batch tile
    # with >=2 grid steps when the batch is large enough (v7x megacore), cap
    # at 256 (sweep 256-512 per generation).
    B4 = _cdiv(B, pack)
    BP8 = _round_up(max(B4, 1), 8)
    if BP8 <= 16:
        TB = BP8
    elif BP8 <= 512:
        TB = _round_up(_cdiv(BP8, 2), 8)
    else:
        TB = 256
    BP = _round_up(BP8, TB)

    # Pack `pack` samples per row: (B,16) -> (BP, pack*16).  Only the batch
    # dim is padded; feature dims stay compact (no 8x HBM inflation).
    xp = jnp.zeros((BP * pack, x_dim), jnp.float32).at[:B].set(
        x.astype(jnp.float32))
    xp = xp.reshape(BP, GD)

    # t as a (1,1) SMEM scalar (caller should pass a device scalar).
    t_arr = jnp.reshape(jnp.asarray(t, jnp.float32), (1, 1))

    out = pl.pallas_call(
        functools.partial(_odefunc_kernel, n_mid=n_mid),
        out_shape=jax.ShapeDtypeStruct((BP, GO), jnp.float32),
        grid=(BP // TB,),
        in_specs=[
            pl.BlockSpec(memory_space=pltpu.MemorySpace.SMEM),    # t (1,1)
            pl.BlockSpec((TB, GD), lambda i: (i, 0)),             # packed x tile
            pl.BlockSpec((GD, GW), lambda i: (0, 0)),             # W0 block-diag (resident)
            pl.BlockSpec((1, GW), lambda i: (0, 0)),              # time row
            pl.BlockSpec((1, GW), lambda i: (0, 0)),              # b0
            pl.BlockSpec((n_mid, GW, GW), lambda i: (0, 0, 0)),   # hidden W stack
            pl.BlockSpec((n_mid, 1, GW), lambda i: (0, 0, 0)),    # hidden b stack
            pl.BlockSpec((GW, GO), lambda i: (0, 0)),             # W_out
            pl.BlockSpec((1, GO), lambda i: (0, 0)),              # b_out
        ],
        out_specs=pl.BlockSpec((TB, GO), lambda i: (i, 0)),
        compiler_params=pltpu.CompilerParams(
            dimension_semantics=("parallel",)),
    )(t_arr, xp, wx, wt, b0p, wh, bh, wop, bop)

    # Unpack lane groups back to per-sample rows and drop batch padding.
    return out.reshape(BP * pack, out_dim)[:B]


# -----------------------------------------------------------------------------
# Deterministic params (PyTorch default Linear init: U(-1/sqrt(fan_in), ...)),
# stored in (in, out) layout, plus a pure-JAX fp32 reference of the torch
# forward used for correctness checking.
# -----------------------------------------------------------------------------
def init_odefunc_params(key, input_dim, output_dim, width=32, depth=8):
    sizes = [input_dim] + [width] * (depth - 1) + [output_dim]
    params = []
    keys = jax.random.split(key, depth)
    for i in range(depth):
        fan_in, fan_out = sizes[i], sizes[i + 1]
        kw, kb = jax.random.split(keys[i])
        bound = 1.0 / np.sqrt(fan_in)
        w = jax.random.uniform(kw, (fan_in, fan_out), jnp.float32, -bound, bound)
        b = jax.random.uniform(kb, (fan_out,), jnp.float32, -bound, bound)
        params.append((w, b))
    return params


def odefunc_forward_ref(t, x, params):
    h = jnp.concatenate([x, jnp.full((x.shape[0], 1), t, x.dtype)], axis=1)
    for w, b in params[:-1]:
        h = jnp.tanh(h @ w + b)
    w, b = params[-1]
    return h @ w + b


if __name__ == "__main__":
    B = 8
    x_feat = 16                 # module's input_dim = x_feat + 1 (time column)
    out_dim = 16
    width, depth = 32, 8        # ODEfunc defaults

    key = jax.random.PRNGKey(0)
    kx, kp = jax.random.split(key)
    x = jax.random.normal(kx, (B, x_feat), jnp.float32)
    t = jnp.float32(0.35)       # device scalar: no host->device push per ODE step

    params = init_odefunc_params(kp, x_feat + 1, out_dim, width, depth)
    # Packed once, reused across every ODE-solver evaluation.
    # pack=4 -> 128-lane groups (safe on v5e/v6e/v7x); use pack=8 on v6e/v7x
    # to fill the 256x256 MXU.
    packed, dims = pack_params(params, x_feat, pack=4,
                               compute_dtype=jnp.bfloat16)

    out = odefunc_forward(t, x, packed, dims)
    out = jax.block_until_ready(out)

    ref = odefunc_forward_ref(t, x, params)

    assert out.shape == (B, out_dim)
    assert out.dtype == jnp.float32
    assert bool(jnp.all(jnp.isfinite(out)))
    # bf16 MXU operands (f32 accumulation) vs fp32 torch reference: tolerance
    # deliberately loosened per the precision/performance trade-off.
    max_err = float(jnp.max(jnp.abs(out - ref)))
    assert bool(jnp.allclose(out, ref, rtol=3e-2, atol=3e-2)), max_err

    print("KERNEL_OK")
</pallas_src>

<mosaic_0001>
module attributes {stable_mosaic.version = 11 : i64} {
  func.func @_odefunc_kernel(%arg0: i32, %arg1: memref<1x1xf32, #tpu.memory_space<smem>>, %arg2: memref<8x64xf32, #tpu.memory_space<vmem>>, %arg3: memref<64x128xbf16, #tpu.memory_space<vmem>>, %arg4: memref<1x128xf32, #tpu.memory_space<vmem>>, %arg5: memref<1x128xf32, #tpu.memory_space<vmem>>, %arg6: memref<6x128x128xbf16, #tpu.memory_space<vmem>>, %arg7: memref<6x1x128xf32, #tpu.memory_space<vmem>>, %arg8: memref<128x64xbf16, #tpu.memory_space<vmem>>, %arg9: memref<1x64xf32, #tpu.memory_space<vmem>>, %arg10: memref<8x64xf32, #tpu.memory_space<vmem>>) attributes {dimension_semantics = [#tpu.dimension_semantics<parallel>], iteration_bounds = array<i64: 1>, scalar_prefetch = 0 : i64, scratch_operands = 0 : i64, tpu.core_type = #tpu.core_type<tc>, window_params = [{transform_indices = @transform_0, window_bounds = array<i64: 1, 1>}, {transform_indices = @transform_1, window_bounds = array<i64: 8, 64>}, {pipeline_mode = #tpu.pipeline_mode<synchronous>, transform_indices = @transform_2, window_bounds = array<i64: 64, 128>}, {pipeline_mode = #tpu.pipeline_mode<synchronous>, transform_indices = @transform_3, window_bounds = array<i64: 1, 128>}, {pipeline_mode = #tpu.pipeline_mode<synchronous>, transform_indices = @transform_4, window_bounds = array<i64: 1, 128>}, {pipeline_mode = #tpu.pipeline_mode<synchronous>, transform_indices = @transform_5, window_bounds = array<i64: 6, 128, 128>}, {pipeline_mode = #tpu.pipeline_mode<synchronous>, transform_indices = @transform_6, window_bounds = array<i64: 6, 1, 128>}, {pipeline_mode = #tpu.pipeline_mode<synchronous>, transform_indices = @transform_7, window_bounds = array<i64: 128, 64>}, {pipeline_mode = #tpu.pipeline_mode<synchronous>, transform_indices = @transform_8, window_bounds = array<i64: 1, 64>}, {transform_indices = @transform_9, window_bounds = array<i64: 8, 64>}]} {
    %c0 = arith.constant 0 : index
    %c0_0 = arith.constant 0 : index
    %0 = memref.load %arg1[%c0, %c0_0] : memref<1x1xf32, #tpu.memory_space<smem>>
    %c0_1 = arith.constant 0 : index
    %c0_2 = arith.constant 0 : index
    %1 = vector.load %arg5[%c0_1, %c0_2] : memref<1x128xf32, #tpu.memory_space<vmem>>, vector<1x128xf32>
    %c0_3 = arith.constant 0 : index
    %c0_4 = arith.constant 0 : index
    %2 = vector.load %arg4[%c0_3, %c0_4] : memref<1x128xf32, #tpu.memory_space<vmem>>, vector<1x128xf32>
    %3 = vector.broadcast %0 : f32 to vector<1x128xf32>
    %4 = arith.mulf %3, %2 : vector<1x128xf32>
    %5 = arith.addf %1, %4 : vector<1x128xf32>
    %c0_5 = arith.constant 0 : index
    %c0_6 = arith.constant 0 : index
    %6 = vector.load %arg2[%c0_5, %c0_6] : memref<8x64xf32, #tpu.memory_space<vmem>>, vector<8x64xf32>
    %7 = arith.truncf %6 : vector<8x64xf32> to vector<8x64xbf16>
    %c0_7 = arith.constant 0 : index
    %c0_8 = arith.constant 0 : index
    %8 = vector.load %arg3[%c0_7, %c0_8] : memref<64x128xbf16, #tpu.memory_space<vmem>>, vector<64x128xbf16>
    %cst = arith.constant dense<0.000000e+00> : vector<8x128xf32>
    %9 = tpu.matmul %7, %8, %cst {dimension_numbers = #tpu.dot_dimension_numbers<[1], [0], [0], [1], [0, 0, 1, 1], [], []>} : vector<8x64xbf16>, vector<64x128xbf16>, vector<8x128xf32> -> vector<8x128xf32>
    %10 = vector.broadcast %5 : vector<1x128xf32> to vector<8x128xf32>
    %11 = arith.addf %9, %10 : vector<8x128xf32>
    %12 = math.tanh %11 : vector<8x128xf32>
    %13 = arith.truncf %12 : vector<8x128xf32> to vector<8x128xbf16>
    %c0_9 = arith.constant 0 : index
    %c0_10 = arith.constant 0 : index
    %c0_11 = arith.constant 0 : index
    %14 = vector.load %arg6[%c0_9, %c0_10, %c0_11] : memref<6x128x128xbf16, #tpu.memory_space<vmem>>, vector<1x128x128xbf16>
    %15 = vector.shape_cast %14 : vector<1x128x128xbf16> to vector<128x128xbf16>
    %cst_12 = arith.constant dense<0.000000e+00> : vector<8x128xf32>
    %16 = tpu.matmul %13, %15, %cst_12 {dimension_numbers = #tpu.dot_dimension_numbers<[1], [0], [0], [1], [0, 0, 1, 1], [], []>} : vector<8x128xbf16>, vector<128x128xbf16>, vector<8x128xf32> -> vector<8x128xf32>
    %c0_13 = arith.constant 0 : index
    %c0_14 = arith.constant 0 : index
    %c0_15 = arith.constant 0 : index
    %17 = vector.load %arg7[%c0_13, %c0_14, %c0_15] : memref<6x1x128xf32, #tpu.memory_space<vmem>>, vector<1x1x128xf32>
    %18 = vector.shape_cast %17 : vector<1x1x128xf32> to vector<1x128xf32>
    %19 = vector.broadcast %18 : vector<1x128xf32> to vector<8x128xf32>
    %20 = arith.addf %16, %19 : vector<8x128xf32>
    %21 = math.tanh %20 : vector<8x128xf32>
    %22 = arith.truncf %21 : vector<8x128xf32> to vector<8x128xbf16>
    %c1 = arith.constant 1 : index
    %c0_16 = arith.constant 0 : index
    %c0_17 = arith.constant 0 : index
    %23 = vector.load %arg6[%c1, %c0_16, %c0_17] : memref<6x128x128xbf16, #tpu.memory_space<vmem>>, vector<1x128x128xbf16>
    %24 = vector.shape_cast %23 : vector<1x128x128xbf16> to vector<128x128xbf16>
    %cst_18 = arith.constant dense<0.000000e+00> : vector<8x128xf32>
    %25 = tpu.matmul %22, %24, %cst_18 {dimension_numbers = #tpu.dot_dimension_numbers<[1], [0], [0], [1], [0, 0, 1, 1], [], []>} : vector<8x128xbf16>, vector<128x128xbf16>, vector<8x128xf32> -> vector<8x128xf32>
    %c1_19 = arith.constant 1 : index
    %c0_20 = arith.constant 0 : index
    %c0_21 = arith.constant 0 : index
    %26 = vector.load %arg7[%c1_19, %c0_20, %c0_21] : memref<6x1x128xf32, #tpu.memory_space<vmem>>, vector<1x1x128xf32>
    %27 = vector.shape_cast %26 : vector<1x1x128xf32> to vector<1x128xf32>
    %28 = vector.broadcast %27 : vector<1x128xf32> to vector<8x128xf32>
    %29 = arith.addf %25, %28 : vector<8x128xf32>
    %30 = math.tanh %29 : vector<8x128xf32>
    %31 = arith.truncf %30 : vector<8x128xf32> to vector<8x128xbf16>
    %c2 = arith.constant 2 : index
    %c0_22 = arith.constant 0 : index
    %c0_23 = arith.constant 0 : index
    %32 = vector.load %arg6[%c2, %c0_22, %c0_23] : memref<6x128x128xbf16, #tpu.memory_space<vmem>>, vector<1x128x128xbf16>
    %33 = vector.shape_cast %32 : vector<1x128x128xbf16> to vector<128x128xbf16>
    %cst_24 = arith.constant dense<0.000000e+00> : vector<8x128xf32>
    %34 = tpu.matmul %31, %33, %cst_24 {dimension_numbers = #tpu.dot_dimension_numbers<[1], [0], [0], [1], [0, 0, 1, 1], [], []>} : vector<8x128xbf16>, vector<128x128xbf16>, vector<8x128xf32> -> vector<8x128xf32>
    %c2_25 = arith.constant 2 : index
    %c0_26 = arith.constant 0 : index
    %c0_27 = arith.constant 0 : index
    %35 = vector.load %arg7[%c2_25, %c0_26, %c0_27] : memref<6x1x128xf32, #tpu.memory_space<vmem>>, vector<1x1x128xf32>
    %36 = vector.shape_cast %35 : vector<1x1x128xf32> to vector<1x128xf32>
    %37 = vector.broadcast %36 : vector<1x128xf32> to vector<8x128xf32>
    %38 = arith.addf %34, %37 : vector<8x128xf32>
    %39 = math.tanh %38 : vector<8x128xf32>
    %40 = arith.truncf %39 : vector<8x128xf32> to vector<8x128xbf16>
    %c3 = arith.constant 3 : index
    %c0_28 = arith.constant 0 : index
    %c0_29 = arith.constant 0 : index
    %41 = vector.load %arg6[%c3, %c0_28, %c0_29] : memref<6x128x128xbf16, #tpu.memory_space<vmem>>, vector<1x128x128xbf16>
    %42 = vector.shape_cast %41 : vector<1x128x128xbf16> to vector<128x128xbf16>
    %cst_30 = arith.constant dense<0.000000e+00> : vector<8x128xf32>
    %43 = tpu.matmul %40, %42, %cst_30 {dimension_numbers = #tpu.dot_dimension_numbers<[1], [0], [0], [1], [0, 0, 1, 1], [], []>} : vector<8x128xbf16>, vector<128x128xbf16>, vector<8x128xf32> -> vector<8x128xf32>
    %c3_31 = arith.constant 3 : index
    %c0_32 = arith.constant 0 : index
    %c0_33 = arith.constant 0 : index
    %44 = vector.load %arg7[%c3_31, %c0_32, %c0_33] : memref<6x1x128xf32, #tpu.memory_space<vmem>>, vector<1x1x128xf32>
    %45 = vector.shape_cast %44 : vector<1x1x128xf32> to vector<1x128xf32>
    %46 = vector.broadcast %45 : vector<1x128xf32> to vector<8x128xf32>
    %47 = arith.addf %43, %46 : vector<8x128xf32>
    %48 = math.tanh %47 : vector<8x128xf32>
    %49 = arith.truncf %48 : vector<8x128xf32> to vector<8x128xbf16>
    %c4 = arith.constant 4 : index
    %c0_34 = arith.constant 0 : index
    %c0_35 = arith.constant 0 : index
    %50 = vector.load %arg6[%c4, %c0_34, %c0_35] : memref<6x128x128xbf16, #tpu.memory_space<vmem>>, vector<1x128x128xbf16>
    %51 = vector.shape_cast %50 : vector<1x128x128xbf16> to vector<128x128xbf16>
    %cst_36 = arith.constant dense<0.000000e+00> : vector<8x128xf32>
    %52 = tpu.matmul %49, %51, %cst_36 {dimension_numbers = #tpu.dot_dimension_numbers<[1], [0], [0], [1], [0, 0, 1, 1], [], []>} : vector<8x128xbf16>, vector<128x128xbf16>, vector<8x128xf32> -> vector<8x128xf32>
    %c4_37 = arith.constant 4 : index
    %c0_38 = arith.constant 0 : index
    %c0_39 = arith.constant 0 : index
    %53 = vector.load %arg7[%c4_37, %c0_38, %c0_39] : memref<6x1x128xf32, #tpu.memory_space<vmem>>, vector<1x1x128xf32>
    %54 = vector.shape_cast %53 : vector<1x1x128xf32> to vector<1x128xf32>
    %55 = vector.broadcast %54 : vector<1x128xf32> to vector<8x128xf32>
    %56 = arith.addf %52, %55 : vector<8x128xf32>
    %57 = math.tanh %56 : vector<8x128xf32>
    %58 = arith.truncf %57 : vector<8x128xf32> to vector<8x128xbf16>
    %c5 = arith.constant 5 : index
    %c0_40 = arith.constant 0 : index
    %c0_41 = arith.constant 0 : index
    %59 = vector.load %arg6[%c5, %c0_40, %c0_41] : memref<6x128x128xbf16, #tpu.memory_space<vmem>>, vector<1x128x128xbf16>
    %60 = vector.shape_cast %59 : vector<1x128x128xbf16> to vector<128x128xbf16>
    %cst_42 = arith.constant dense<0.000000e+00> : vector<8x128xf32>
    %61 = tpu.matmul %58, %60, %cst_42 {dimension_numbers = #tpu.dot_dimension_numbers<[1], [0], [0], [1], [0, 0, 1, 1], [], []>} : vector<8x128xbf16>, vector<128x128xbf16>, vector<8x128xf32> -> vector<8x128xf32>
    %c5_43 = arith.constant 5 : index
    %c0_44 = arith.constant 0 : index
    %c0_45 = arith.constant 0 : index
    %62 = vector.load %arg7[%c5_43, %c0_44, %c0_45] : memref<6x1x128xf32, #tpu.memory_space<vmem>>, vector<1x1x128xf32>
    %63 = vector.shape_cast %62 : vector<1x1x128xf32> to vector<1x128xf32>
    %64 = vector.broadcast %63 : vector<1x128xf32> to vector<8x128xf32>
    %65 = arith.addf %61, %64 : vector<8x128xf32>
    %66 = math.tanh %65 : vector<8x128xf32>
    %67 = arith.truncf %66 : vector<8x128xf32> to vector<8x128xbf16>
    %c0_46 = arith.constant 0 : index
    %c0_47 = arith.constant 0 : index
    %68 = vector.load %arg8[%c0_46, %c0_47] : memref<128x64xbf16, #tpu.memory_space<vmem>>, vector<128x64xbf16>
    %cst_48 = arith.constant dense<0.000000e+00> : vector<8x64xf32>
    %69 = tpu.matmul %67, %68, %cst_48 {dimension_numbers = #tpu.dot_dimension_numbers<[1], [0], [0], [1], [0, 0, 1, 1], [], []>} : vector<8x128xbf16>, vector<128x64xbf16>, vector<8x64xf32> -> vector<8x64xf32>
    %c0_49 = arith.constant 0 : index
    %c0_50 = arith.constant 0 : index
    %70 = vector.load %arg9[%c0_49, %c0_50] : memref<1x64xf32, #tpu.memory_space<vmem>>, vector<1x64xf32>
    %71 = vector.broadcast %70 : vector<1x64xf32> to vector<8x64xf32>
    %72 = arith.addf %69, %71 : vector<8x64xf32>
    %c0_51 = arith.constant 0 : index
    %c0_52 = arith.constant 0 : index
    %73 = vector.load %arg10[%c0_51, %c0_52] : memref<8x64xf32, #tpu.memory_space<vmem>>, vector<8x64xf32>
    tpu.vector_store %arg10[%c0_51, %c0_52], %72 {strides = array<i32>} : memref<8x64xf32, #tpu.memory_space<vmem>>, vector<8x64xf32>,
    return
  }
  func.func @transform_0(%arg0: i32) -> (i32, i32) {
    %c0_i32 = arith.constant 0 : i32
    %c0_i32_0 = arith.constant 0 : i32
    %c0_i32_1 = arith.constant 0 : i32
    return %c0_i32, %c0_i32_0 : i32, i32
  }
  func.func @transform_1(%arg0: i32) -> (i32, i32) {
    %c0_i32 = arith.constant 0 : i32
    %c0_i32_0 = arith.constant 0 : i32
    return %arg0, %c0_i32 : i32, i32
  }
  func.func @transform_2(%arg0: i32) -> (i32, i32) {
    %c0_i32 = arith.constant 0 : i32
    %c0_i32_0 = arith.constant 0 : i32
    %c0_i32_1 = arith.constant 0 : i32
    return %c0_i32, %c0_i32_0 : i32, i32
  }
  func.func @transform_3(%arg0: i32) -> (i32, i32) {
    %c0_i32 = arith.constant 0 : i32
    %c0_i32_0 = arith.constant 0 : i32
    %c0_i32_1 = arith.constant 0 : i32
    return %c0_i32, %c0_i32_0 : i32, i32
  }
  func.func @transform_4(%arg0: i32) -> (i32, i32) {
    %c0_i32 = arith.constant 0 : i32
    %c0_i32_0 = arith.constant 0 : i32
    %c0_i32_1 = arith.constant 0 : i32
    return %c0_i32, %c0_i32_0 : i32, i32
  }
  func.func @transform_5(%arg0: i32) -> (i32, i32, i32) {
    %c0_i32 = arith.constant 0 : i32
    %c0_i32_0 = arith.constant 0 : i32
    %c0_i32_1 = arith.constant 0 : i32
    %c0_i32_2 = arith.constant 0 : i32
    return %c0_i32, %c0_i32_0, %c0_i32_1 : i32, i32, i32
  }
  func.func @transform_6(%arg0: i32) -> (i32, i32, i32) {
    %c0_i32 = arith.constant 0 : i32
    %c0_i32_0 = arith.constant 0 : i32
    %c0_i32_1 = arith.constant 0 : i32
    %c0_i32_2 = arith.constant 0 : i32
    return %c0_i32, %c0_i32_0, %c0_i32_1 : i32, i32, i32
  }
  func.func @transform_7(%arg0: i32) -> (i32, i32) {
    %c0_i32 = arith.constant 0 : i32
    %c0_i32_0 = arith.constant 0 : i32
    %c0_i32_1 = arith.constant 0 : i32
    return %c0_i32, %c0_i32_0 : i32, i32
  }
  func.func @transform_8(%arg0: i32) -> (i32, i32) {
    %c0_i32 = arith.constant 0 : i32
    %c0_i32_0 = arith.constant 0 : i32
    %c0_i32_1 = arith.constant 0 : i32
    return %c0_i32, %c0_i32_0 : i32, i32
  }
  func.func @transform_9(%arg0: i32) -> (i32, i32) {
    %c0_i32 = arith.constant 0 : i32
    %c0_i32_0 = arith.constant 0 : i32
    return %arg0, %c0_i32 : i32, i32
  }
}

</mosaic_0001>

<llo_original>
// kernel: odefunc_forward.1
$region0: #{odefunc_forward.1}
  #allocation0 [shape = 'u32[]', space=smem, size = 0x4, offset = 0x4, fixed_abs, tag = 'smem constant byte address 0x4 - core index']
  #allocation1 [shape = 'u32[144,128]{1,0:T(1,128)}', space=vmem, size = 0x12000, scoped, tag = 'internal scratch']
  #allocation2 [shape = 'f32[1,1]{1,0:T(1,128)S(6)}', space=smem, size = 0x200, scoped, tag = 'scoped memory for odefunc_forward.1']
  %s0 = inlined_call_operand.<no memory space> [shape: f32[1,1], index: 0, kind: input, shape index: {}]
  %s1 = inlined_call_operand.vmem [shape: f32[8,64], index: 1, kind: input, shape index: {}]
  %s2 = inlined_call_operand.vmem [shape: bf16[64,128], index: 2, kind: input, shape index: {}]
  %s3 = inlined_call_operand.vmem [shape: f32[1,128], index: 3, kind: input, shape index: {}]
  %s4 = inlined_call_operand.vmem [shape: f32[1,128], index: 4, kind: input, shape index: {}]
  %s5 = inlined_call_operand.hbm [shape: bf16[6,128,128], index: 5, kind: input, shape index: {}]
  %s6 = inlined_call_operand.vmem [shape: f32[6,1,128], index: 6, kind: input, shape index: {}]
  %s7 = inlined_call_operand.vmem [shape: bf16[128,64], index: 7, kind: input, shape index: {}]
  %s8 = inlined_call_operand.vmem [shape: f32[1,64], index: 8, kind: input, shape index: {}]
  %s9 = inlined_call_operand.vmem [shape: f32[8,64], index: 9, kind: output, shape index: {}]
  %s10 = sld [smem:[#allocation0]]
  $region50: #{odefunc_forward.1} parent=0
    _
  %s12 = ssub.s32 1, %s10
  %s13 = scalar_select 0, %s12, %s10
  %14 = sst [smem:[#allocation2]] %s0
  $region1: #{odefunc_forward.1} parent=0
    #allocation3 [shape = 'u8[196608]{0}', space=vmem, size = 0x30000, scoped, tag = 'input window, operand 5, single buffered']
    #allocation4 [shape = 's32[1]{0}', space=sflag, size = 0x4, scoped, tag = 'scoped memory for odefunc_forward.1']
    %15 = vsyncpa [#allocation4], 0
    // Predicated region
    $region2: #{odefunc_forward.1} parent=1 // pred_check
      _
    $region3: #{odefunc_forward.1} parent=1 // pred_check_branch
      %17 = sbr.rel (0) target = $region5
    $region4: #{odefunc_forward.1} parent=1 // pred_region
      _
    $region5: #{odefunc_forward.1} parent=1 // pred_fallthru
      _
    // Predicated region
    $region6: #{odefunc_forward.1} parent=1 // pred_check
      _
    $region7: #{odefunc_forward.1} parent=1 // pred_check_branch
      %19 = sbr.rel (0) target = $region9
    $region8: #{odefunc_forward.1} parent=1 // pred_region
      _
    $region9: #{odefunc_forward.1} parent=1 // pred_fallthru
      _
    // Predicated region
    $region10: #{odefunc_forward.1} parent=1 // pred_check
      _
    $region11: #{odefunc_forward.1} parent=1 // pred_check_branch
      %21 = sbr.rel (0) target = $region13
    $region12: #{odefunc_forward.1} parent=1 // pred_region
      _
    $region13: #{odefunc_forward.1} parent=1 // pred_fallthru
      _
    // Predicated region
    $region14: #{odefunc_forward.1} parent=1 // pred_check
      _
    $region15: #{odefunc_forward.1} parent=1 // pred_check_branch
      %23 = sbr.rel (0) target = $region17
    $region16: #{odefunc_forward.1} parent=1 // pred_region
      _
    $region17: #{odefunc_forward.1} parent=1 // pred_fallthru
      _
    // Predicated region
    $region18: #{odefunc_forward.1} parent=1 // pred_check
      _
    $region19: #{odefunc_forward.1} parent=1 // pred_check_branch
      %25 = sbr.rel (0) target = $region21
    $region20: #{odefunc_forward.1} parent=1 // pred_region
      _
    $region21: #{odefunc_forward.1} parent=1 // pred_fallthru
      _
    // Predicated region
    $region22: #{odefunc_forward.1} parent=1 // pred_check
      _
    $region23: #{odefunc_forward.1} parent=1 // pred_check_branch
      %27 = sbr.rel (0) target = $region25
    $region24: #{odefunc_forward.1} parent=1 // pred_region
      %s29 = ssub.s32 6144, 6144
      %30 = vsyncadd [#allocation4], %s29
      %s31 = sshll.u32 [#allocation3], 4
      %s32 = int_to_ptr.vmem [resolvable:$true] %s31
      %37 = dma.hbm_to_vmem [thread:$0]  %s5, 6144, %s32, [#allocation4], 64, 64, 4
    $region25: #{odefunc_forward.1} parent=1 // pred_fallthru
      _
    // Predicated region
    $region26: #{odefunc_forward.1} parent=1 // pred_check
      _
    $region27: #{odefunc_forward.1} parent=1 // pred_check_branch
      %39 = sbr.rel (0) target = $region29
    $region28: #{odefunc_forward.1} parent=1 // pred_region
      _
    $region29: #{odefunc_forward.1} parent=1 // pred_fallthru
      _
    // Predicated region
    $region30: #{odefunc_forward.1} parent=1 // pred_check
      _
    $region31: #{odefunc_forward.1} parent=1 // pred_check_branch
      %41 = sbr.rel (0) target = $region33
    $region32: #{odefunc_forward.1} parent=1 // pred_region
      _
    $region33: #{odefunc_forward.1} parent=1 // pred_fallthru
      _
    // Predicated region
    $region34: #{odefunc_forward.1} parent=1 // pred_check
      _
    $region35: #{odefunc_forward.1} parent=1 // pred_check_branch
      %43 = sbr.rel (0) target = $region37
    $region36: #{odefunc_forward.1} parent=1 // pred_region
      _
    $region37: #{odefunc_forward.1} parent=1 // pred_fallthru
      _
    // Predicated region
    $region38: #{odefunc_forward.1} parent=1 // pred_check
      _
    $region39: #{odefunc_forward.1} parent=1 // pred_check_branch
      %45 = sbr.rel (0) target = $region41
    $region40: #{odefunc_forward.1} parent=1 // pred_region
      %46 = dma.done [#allocation4], 6144
    $region41: #{odefunc_forward.1} parent=1 // pred_fallthru
      _
    %s48 = sld [smem:[#allocation2]]
    %v49 = vld [vmem:[%s4] sm:$0x1]
    %v50 = vld [vmem:[%s3] sm:$0x1]
    %v51 = vstv %s48
    %v52 = vmul.f32 %v51, %v50
    %v53 = vadd.f32 %v49, %v52
    %v54 = vld [vmem:[%s1] sm:$0xff]
    %v55 = vpack.c.bf16 %v54, %v54
    %v56 = vld [vmem:[%s2] sm:$0xf]
    %v57 = vld [vmem:[%s2 + $0x4] sm:$0xf]
    %v58 = vld [vmem:[%s2 + $0x8] sm:$0xf]
    %v59 = vld [vmem:[%s2 + $0xc] sm:$0xf]
    %v60 = vld [vmem:[%s2 + $0x10] sm:$0xf]
    %v61 = vld [vmem:[%s2 + $0x14] sm:$0xf]
    %v62 = vld [vmem:[%s2 + $0x18] sm:$0xf]
    %v63 = vld [vmem:[%s2 + $0x1c] sm:$0xf]
    %v65 = vlaneseq
    %v66 = vshrl.u32 %v65, 7
    %v67 = vsub.s32 0, %v66
    %v68 = vrot.slane %v53, %v67
    %v78 = vunpack.c.l.b16 %v56
    %v79 = vunpack.c.l.b16 %v57
    %v80 = vunpack.c.l.b16 %v58
    %v81 = vunpack.c.l.b16 %v59
    %v82 = vunpack.c.l.b16 %v60
    %v83 = vunpack.c.l.b16 %v61
    %v84 = vunpack.c.l.b16 %v62
    %v85 = vunpack.c.l.b16 %v63
    %v86 = vpack.c.b16 %v79, %v78
    %v87 = vpack.c.b16 %v81, %v80
    %v88 = vpack.c.b16 %v83, %v82
    %v89 = vpack.c.b16 %v85, %v84
    %vm94 = vcmask 523264
    %v96 = vsel %vm94, %v55, 0
    %98 = vmatprep.subr.bf16.mxu0 0
    %99 = vmatpush1.bf16.msra.mxu0 0
    %100 = vmatprep.subr.bf16.mxu0 0
    %101 = vmatpush1.bf16.msra.mxu0 0
    %102 = vmatprep.subr.bf16.mxu0 0
    %103 = vmatpush1.bf16.msra.mxu0 0
    %104 = vmatprep.subr.bf16.mxu0 0
    %105 = vmatpush1.bf16.msra.mxu0 0
    %106 = vmatprep.subr.bf16.mxu0 0
    %107 = vmatpush1.bf16.msra.mxu0 %v89
    %108 = vmatprep.subr.bf16.mxu0 0
    %109 = vmatpush1.bf16.msra.mxu0 %v88
    %110 = vmatprep.subr.bf16.mxu0 0
    %111 = vmatpush1.bf16.msra.mxu0 %v87
    %112 = vmatprep.subr.bf16.mxu0 0
    %113 = vmatpush1.bf16.msra.mxu0 %v86
    %114 = vmatprep.subr.bf16.mxu0 0
    %115 = vmatpush2.bf16.msra.mxu0 0
    %116 = vmatprep.subr.bf16.mxu0 0
    %117 = vmatpush2.bf16.msra.mxu0 0
    %118 = vmatprep.subr.bf16.mxu0 0
    %119 = vmatpush2.bf16.msra.mxu0 0
    %120 = vmatprep.subr.bf16.mxu0 0
    %121 = vmatpush2.bf16.msra.mxu0 0
    %122 = vmatprep.subr.bf16.mxu0 0
    %123 = vmatpush2.bf16.msra.mxu0 0
    %124 = vmatprep.subr.bf16.mxu0 0
    %125 = vmatpush2.bf16.msra.mxu0 0
    %126 = vmatprep.subr.bf16.mxu0 0
    %127 = vmatpush2.bf16.msra.mxu0 0
    %128 = vmatprep.subr.bf16.mxu0 0
    %129 = vmatpush2.bf16.msra.mxu0 0
    %130 = vmatprep.mubr.bf16.mxu0 0
    %131 = vmatmul.mubr.bf16.gmra.mxu0 %v96
    %v132 = vpop.f32.mrf.mxu0
    %v133 = vadd.f32 %v68, %v132
    %v134 = vpop.f32.mrf.mxu0
    %v135 = vpop.f32.mrf.mxu0
    %v136 = vpop.f32.mrf.mxu0
    %137 = vdwg.mxu0
    %v138 = vtanh.pop %v133
    %v139 = vpack.c.bf16 %v138, %v138
    %v140 = vld [vmem:[#allocation3] sm:$0xf]
    %v141 = vld [vmem:[#allocation3 + $0x4] sm:$0xf]
    %v142 = vld [vmem:[#allocation3 + $0x8] sm:$0xf]
    %v143 = vld [vmem:[#allocation3 + $0xc] sm:$0xf]
    %v144 = vld [vmem:[#allocation3 + $0x10] sm:$0xf]
    %v145 = vld [vmem:[#allocation3 + $0x14] sm:$0xf]
    %v146 = vld [vmem:[#allocation3 + $0x18] sm:$0xf]
    %v147 = vld [vmem:[#allocation3 + $0x1c] sm:$0xf]
    %v148 = vld [vmem:[#allocation3 + $0x20] sm:$0xf]
    %v149 = vld [vmem:[#allocation3 + $0x24] sm:$0xf]
    %v150 = vld [vmem:[#allocation3 + $0x28] sm:$0xf]
    %v151 = vld [vmem:[#allocation3 + $0x2c] sm:$0xf]
    %v152 = vld [vmem:[#allocation3 + $0x30] sm:$0xf]
    %v153 = vld [vmem:[#allocation3 + $0x34] sm:$0xf]
    %v154 = vld [vmem:[#allocation3 + $0x38] sm:$0xf]
    %v155 = vld [vmem:[#allocation3 + $0x3c] sm:$0xf]
    %v156 = vld [vmem:[%s6] sm:$0x1]
    %v158 = vlaneseq
    %v159 = vshrl.u32 %v158, 7
    %v160 = vsub.s32 0, %v159
    %v161 = vrot.slane %v156, %v160
    %v179 = vunpack.c.l.b16 %v140
    %v180 = vunpack.c.l.b16 %v141
    %v181 = vunpack.c.l.b16 %v142
    %v182 = vunpack.c.l.b16 %v143
    %v183 = vunpack.c.l.b16 %v144
    %v184 = vunpack.c.l.b16 %v145
    %v185 = vunpack.c.l.b16 %v146
    %v186 = vunpack.c.l.b16 %v147
    %v187 = vunpack.c.l.b16 %v148
    %v188 = vunpack.c.l.b16 %v149
    %v189 = vunpack.c.l.b16 %v150
    %v190 = vunpack.c.l.b16 %v151
    %v191 = vunpack.c.l.b16 %v152
    %v192 = vunpack.c.l.b16 %v153
    %v193 = vunpack.c.l.b16 %v154
    %v194 = vunpack.c.l.b16 %v155
    %v195 = vpack.c.b16 %v180, %v179
    %v196 = vpack.c.b16 %v182, %v181
    %v197 = vpack.c.b16 %v184, %v183
    %v198 = vpack.c.b16 %v186, %v185
    %v199 = vpack.c.b16 %v188, %v187
    %v200 = vpack.c.b16 %v190, %v189
    %v201 = vpack.c.b16 %v192, %v191
    %v202 = vpack.c.b16 %v194, %v193
    %211 = vmatprep.subr.bf16.mxu0 0
    %212 = vmatpush1.bf16.msra.mxu0 %v202
    %213 = vmatprep.subr.bf16.mxu0 0
    %214 = vmatpush1.bf16.msra.mxu0 %v201
    %215 = vmatprep.subr.bf16.mxu0 0
    %216 = vmatpush1.bf16.msra.mxu0 %v200
    %217 = vmatprep.subr.bf16.mxu0 0
    %218 = vmatpush1.bf16.msra.mxu0 %v199
    %219 = vmatprep.subr.bf16.mxu0 0
    %220 = vmatpush1.bf16.msra.mxu0 %v198
    %221 = vmatprep.subr.bf16.mxu0 0
    %222 = vmatpush1.bf16.msra.mxu0 %v197
    %223 = vmatprep.subr.bf16.mxu0 0
    %224 = vmatpush1.bf16.msra.mxu0 %v196
    %225 = vmatprep.subr.bf16.mxu0 0
    %226 = vmatpush1.bf16.msra.mxu0 %v195
    %227 = vmatprep.subr.bf16.mxu0 0
    %228 = vmatpush2.bf16.msra.mxu0 0
    %229 = vmatprep.subr.bf16.mxu0 0
    %230 = vmatpush2.bf16.msra.mxu0 0
    %231 = vmatprep.subr.bf16.mxu0 0
    %232 = vmatpush2.bf16.msra.mxu0 0
    %233 = vmatprep.subr.bf16.mxu0 0
    %234 = vmatpush2.bf16.msra.mxu0 0
    %235 = vmatprep.subr.bf16.mxu0 0
    %236 = vmatpush2.bf16.msra.mxu0 0
    %237 = vmatprep.subr.bf16.mxu0 0
    %238 = vmatpush2.bf16.msra.mxu0 0
    %239 = vmatprep.subr.bf16.mxu0 0
    %240 = vmatpush2.bf16.msra.mxu0 0
    %241 = vmatprep.subr.bf16.mxu0 0
    %242 = vmatpush2.bf16.msra.mxu0 0
    %243 = vmatprep.mubr.bf16.mxu0 0
    %244 = vmatmul.mubr.bf16.gmra.mxu0 %v139
    %v245 = vpop.f32.mrf.mxu0
    %v246 = vadd.f32 %v161, %v245
    %v247 = vpop.f32.mrf.mxu0
    %v248 = vpop.f32.mrf.mxu0
    %v249 = vpop.f32.mrf.mxu0
    %250 = vdwg.mxu0
    %v251 = vtanh.pop %v246
    %v252 = vpack.c.bf16 %v251, %v251
    %s253 = scalar_lea.vmem [#allocation3], 64
    %v254 = vld [vmem:[%s253] sm:$0xf]
    %v255 = vld [vmem:[%s253 + $0x4] sm:$0xf]
    %v256 = vld [vmem:[%s253 + $0x8] sm:$0xf]
    %v257 = vld [vmem:[%s253 + $0xc] sm:$0xf]
    %v258 = vld [vmem:[%s253 + $0x10] sm:$0xf]
    %v259 = vld [vmem:[%s253 + $0x14] sm:$0xf]
    %v260 = vld [vmem:[%s253 + $0x18] sm:$0xf]
    %v261 = vld [vmem:[%s253 + $0x1c] sm:$0xf]
    %v262 = vld [vmem:[%s253 + $0x20] sm:$0xf]
    %v263 = vld [vmem:[%s253 + $0x24] sm:$0xf]
    %v264 = vld [vmem:[%s253 + $0x28] sm:$0xf]
    %v265 = vld [vmem:[%s253 + $0x2c] sm:$0xf]
    %v266 = vld [vmem:[%s253 + $0x30] sm:$0xf]
    %v267 = vld [vmem:[%s253 + $0x34] sm:$0xf]
    %v268 = vld [vmem:[%s253 + $0x38] sm:$0xf]
    %v269 = vld [vmem:[%s253 + $0x3c] sm:$0xf]
    %s270 = scalar_lea.vmem %s6, 1
    %v271 = vld [vmem:[%s270] sm:$0x1]
    %v273 = vlaneseq
    %v274 = vshrl.u32 %v273, 7
    %v275 = vsub.s32 0, %v274
    %v276 = vrot.slane %v271, %v275
    %v294 = vunpack.c.l.b16 %v254
    %v295 = vunpack.c.l.b16 %v255
    %v296 = vunpack.c.l.b16 %v256
    %v297 = vunpack.c.l.b16 %v257
    %v298 = vunpack.c.l.b16 %v258
    %v299 = vunpack.c.l.b16 %v259
    %v300 = vunpack.c.l.b16 %v260
    %v301 = vunpack.c.l.b16 %v261
    %v302 = vunpack.c.l.b16 %v262
    %v303 = vunpack.c.l.b16 %v263
    %v304 = vunpack.c.l.b16 %v264
    %v305 = vunpack.c.l.b16 %v265
    %v306 = vunpack.c.l.b16 %v266
    %v307 = vunpack.c.l.b16 %v267
    %v308 = vunpack.c.l.b16 %v268
    %v309 = vunpack.c.l.b16 %v269
    %v310 = vpack.c.b16 %v295, %v294
    %v311 = vpack.c.b16 %v297, %v296
    %v312 = vpack.c.b16 %v299, %v298
    %v313 = vpack.c.b16 %v301, %v300
    %v314 = vpack.c.b16 %v303, %v302
    %v315 = vpack.c.b16 %v305, %v304
    %v316 = vpack.c.b16 %v307, %v306
    %v317 = vpack.c.b16 %v309, %v308
    %326 = vmatprep.subr.bf16.mxu0 0
    %327 = vmatpush1.bf16.msra.mxu0 %v317
    %328 = vmatprep.subr.bf16.mxu0 0
    %329 = vmatpush1.bf16.msra.mxu0 %v316
    %330 = vmatprep.subr.bf16.mxu0 0
    %331 = vmatpush1.bf16.msra.mxu0 %v315
    %332 = vmatprep.subr.bf16.mxu0 0
    %333 = vmatpush1.bf16.msra.mxu0 %v314
    %334 = vmatprep.subr.bf16.mxu0 0
    %335 = vmatpush1.bf16.msra.mxu0 %v313
    %336 = vmatprep.subr.bf16.mxu0 0
    %337 = vmatpush1.bf16.msra.mxu0 %v312
    %338 = vmatprep.subr.bf16.mxu0 0
    %339 = vmatpush1.bf16.msra.mxu0 %v311
    %340 = vmatprep.subr.bf16.mxu0 0
    %341 = vmatpush1.bf16.msra.mxu0 %v310
    %342 = vmatprep.subr.bf16.mxu0 0
    %343 = vmatpush2.bf16.msra.mxu0 0
    %344 = vmatprep.subr.bf16.mxu0 0
    %345 = vmatpush2.bf16.msra.mxu0 0
    %346 = vmatprep.subr.bf16.mxu0 0
    %347 = vmatpush2.bf16.msra.mxu0 0
    %348 = vmatprep.subr.bf16.mxu0 0
    %349 = vmatpush2.bf16.msra.mxu0 0
    %350 = vmatprep.subr.bf16.mxu0 0
    %351 = vmatpush2.bf16.msra.mxu0 0
    %352 = vmatprep.subr.bf16.mxu0 0
    %353 = vmatpush2.bf16.msra.mxu0 0
    %354 = vmatprep.subr.bf16.mxu0 0
    %355 = vmatpush2.bf16.msra.mxu0 0
    %356 = vmatprep.subr.bf16.mxu0 0
    %357 = vmatpush2.bf16.msra.mxu0 0
    %358 = vmatprep.mubr.bf16.mxu0 0
    %359 = vmatmul.mubr.bf16.gmra.mxu0 %v252
    %v360 = vpop.f32.mrf.mxu0
    %v361 = vadd.f32 %v276, %v360
    %v362 = vpop.f32.mrf.mxu0
    %v363 = vpop.f32.mrf.mxu0
    %v364 = vpop.f32.mrf.mxu0
    %365 = vdwg.mxu0
    %v366 = vtanh.pop %v361
    %v367 = vpack.c.bf16 %v366, %v366
    %s368 = scalar_lea.vmem [#allocation3], 128
    %v369 = vld [vmem:[%s368] sm:$0xf]
    %v370 = vld [vmem:[%s368 + $0x4] sm:$0xf]
    %v371 = vld [vmem:[%s368 + $0x8] sm:$0xf]
    %v372 = vld [vmem:[%s368 + $0xc] sm:$0xf]
    %v373 = vld [vmem:[%s368 + $0x10] sm:$0xf]
    %v374 = vld [vmem:[%s368 + $0x14] sm:$0xf]
    %v375 = vld [vmem:[%s368 + $0x18] sm:$0xf]
    %v376 = vld [vmem:[%s368 + $0x1c] sm:$0xf]
    %v377 = vld [vmem:[%s368 + $0x20] sm:$0xf]
    %v378 = vld [vmem:[%s368 + $0x24] sm:$0xf]
    %v379 = vld [vmem:[%s368 + $0x28] sm:$0xf]
    %v380 = vld [vmem:[%s368 + $0x2c] sm:$0xf]
    %v381 = vld [vmem:[%s368 + $0x30] sm:$0xf]
    %v382 = vld [vmem:[%s368 + $0x34] sm:$0xf]
    %v383 = vld [vmem:[%s368 + $0x38] sm:$0xf]
    %v384 = vld [vmem:[%s368 + $0x3c] sm:$0xf]
    %s385 = scalar_lea.vmem %s6, 2
    %v386 = vld [vmem:[%s385] sm:$0x1]
    %v388 = vlaneseq
    %v389 = vshrl.u32 %v388, 7
    %v390 = vsub.s32 0, %v389
    %v391 = vrot.slane %v386, %v390
    %v409 = vunpack.c.l.b16 %v369
    %v410 = vunpack.c.l.b16 %v370
    %v411 = vunpack.c.l.b16 %v371
    %v412 = vunpack.c.l.b16 %v372
    %v413 = vunpack.c.l.b16 %v373
    %v414 = vunpack.c.l.b16 %v374
    %v415 = vunpack.c.l.b16 %v375
    %v416 = vunpack.c.l.b16 %v376
    %v417 = vunpack.c.l.b16 %v377
    %v418 = vunpack.c.l.b16 %v378
    %v419 = vunpack.c.l.b16 %v379
    %v420 = vunpack.c.l.b16 %v380
    %v421 = vunpack.c.l.b16 %v381
    %v422 = vunpack.c.l.b16 %v382
    %v423 = vunpack.c.l.b16 %v383
    %v424 = vunpack.c.l.b16 %v384
    %v425 = vpack.c.b16 %v410, %v409
    %v426 = vpack.c.b16 %v412, %v411
    %v427 = vpack.c.b16 %v414, %v413
    %v428 = vpack.c.b16 %v416, %v415
    %v429 = vpack.c.b16 %v418, %v417
    %v430 = vpack.c.b16 %v420, %v419
    %v431 = vpack.c.b16 %v422, %v421
    %v432 = vpack.c.b16 %v424, %v423
    %441 = vmatprep.subr.bf16.mxu0 0
    %442 = vmatpush1.bf16.msra.mxu0 %v432
    %443 = vmatprep.subr.bf16.mxu0 0
    %444 = vmatpush1.bf16.msra.mxu0 %v431
    %445 = vmatprep.subr.bf16.mxu0 0
    %446 = vmatpush1.bf16.msra.mxu0 %v430
    %447 = vmatprep.subr.bf16.mxu0 0
    %448 = vmatpush1.bf16.msra.mxu0 %v429
    %449 = vmatprep.subr.bf16.mxu0 0
    %450 = vmatpush1.bf16.msra.mxu0 %v428
    %451 = vmatprep.subr.bf16.mxu0 0
    %452 = vmatpush1.bf16.msra.mxu0 %v427
    %453 = vmatprep.subr.bf16.mxu0 0
    %454 = vmatpush1.bf16.msra.mxu0 %v426
    %455 = vmatprep.subr.bf16.mxu0 0
    %456 = vmatpush1.bf16.msra.mxu0 %v425
    %457 = vmatprep.subr.bf16.mxu0 0
    %458 = vmatpush2.bf16.msra.mxu0 0
    %459 = vmatprep.subr.bf16.mxu0 0
    %460 = vmatpush2.bf16.msra.mxu0 0
    %461 = vmatprep.subr.bf16.mxu0 0
    %462 = vmatpush2.bf16.msra.mxu0 0
    %463 = vmatprep.subr.bf16.mxu0 0
    %464 = vmatpush2.bf16.msra.mxu0 0
    %465 = vmatprep.subr.bf16.mxu0 0
    %466 = vmatpush2.bf16.msra.mxu0 0
    %467 = vmatprep.subr.bf16.mxu0 0
    %468 = vmatpush2.bf16.msra.mxu0 0
    %469 = vmatprep.subr.bf16.mxu0 0
    %470 = vmatpush2.bf16.msra.mxu0 0
    %471 = vmatprep.subr.bf16.mxu0 0
    %472 = vmatpush2.bf16.msra.mxu0 0
    %473 = vmatprep.mubr.bf16.mxu0 0
    %474 = vmatmul.mubr.bf16.gmra.mxu0 %v367
    %v475 = vpop.f32.mrf.mxu0
    %v476 = vadd.f32 %v391, %v475
    %v477 = vpop.f32.mrf.mxu0
    %v478 = vpop.f32.mrf.mxu0
    %v479 = vpop.f32.mrf.mxu0
    %480 = vdwg.mxu0
    %v481 = vtanh.pop %v476
    %v482 = vpack.c.bf16 %v481, %v481
    %s483 = scalar_lea.vmem [#allocation3], 192
    %v484 = vld [vmem:[%s483] sm:$0xf]
    %v485 = vld [vmem:[%s483 + $0x4] sm:$0xf]
    %v486 = vld [vmem:[%s483 + $0x8] sm:$0xf]
    %v487 = vld [vmem:[%s483 + $0xc] sm:$0xf]
    %v488 = vld [vmem:[%s483 + $0x10] sm:$0xf]
    %v489 = vld [vmem:[%s483 + $0x14] sm:$0xf]
    %v490 = vld [vmem:[%s483 + $0x18] sm:$0xf]
    %v491 = vld [vmem:[%s483 + $0x1c] sm:$0xf]
    %v492 = vld [vmem:[%s483 + $0x20] sm:$0xf]
    %v493 = vld [vmem:[%s483 + $0x24] sm:$0xf]
    %v494 = vld [vmem:[%s483 + $0x28] sm:$0xf]
    %v495 = vld [vmem:[%s483 + $0x2c] sm:$0xf]
    %v496 = vld [vmem:[%s483 + $0x30] sm:$0xf]
    %v497 = vld [vmem:[%s483 + $0x34] sm:$0xf]
    %v498 = vld [vmem:[%s483 + $0x38] sm:$0xf]
    %v499 = vld [vmem:[%s483 + $0x3c] sm:$0xf]
    %s500 = scalar_lea.vmem %s6, 3
    %v501 = vld [vmem:[%s500] sm:$0x1]
    %v503 = vlaneseq
    %v504 = vshrl.u32 %v503, 7
    %v505 = vsub.s32 0, %v504
    %v506 = vrot.slane %v501, %v505
    %v524 = vunpack.c.l.b16 %v484
    %v525 = vunpack.c.l.b16 %v485
    %v526 = vunpack.c.l.b16 %v486
    %v527 = vunpack.c.l.b16 %v487
    %v528 = vunpack.c.l.b16 %v488
    %v529 = vunpack.c.l.b16 %v489
    %v530 = vunpack.c.l.b16 %v490
    %v531 = vunpack.c.l.b16 %v491
    %v532 = vunpack.c.l.b16 %v492
    %v533 = vunpack.c.l.b16 %v493
    %v534 = vunpack.c.l.b16 %v494
    %v535 = vunpack.c.l.b16 %v495
    %v536 = vunpack.c.l.b16 %v496
    %v537 = vunpack.c.l.b16 %v497
    %v538 = vunpack.c.l.b16 %v498
    %v539 = vunpack.c.l.b16 %v499
    %v540 = vpack.c.b16 %v525, %v524
    %v541 = vpack.c.b16 %v527, %v526
    %v542 = vpack.c.b16 %v529, %v528
    %v543 = vpack.c.b16 %v531, %v530
    %v544 = vpack.c.b16 %v533, %v532
    %v545 = vpack.c.b16 %v535, %v534
    %v546 = vpack.c.b16 %v537, %v536
    %v547 = vpack.c.b16 %v539, %v538
    %556 = vmatprep.subr.bf16.mxu0 0
    %557 = vmatpush1.bf16.msra.mxu0 %v547
    %558 = vmatprep.subr.bf16.mxu0 0
    %559 = vmatpush1.bf16.msra.mxu0 %v546
    %560 = vmatprep.subr.bf16.mxu0 0
    %561 = vmatpush1.bf16.msra.mxu0 %v545
    %562 = vmatprep.subr.bf16.mxu0 0
    %563 = vmatpush1.bf16.msra.mxu0 %v544
    %564 = vmatprep.subr.bf16.mxu0 0
    %565 = vmatpush1.bf16.msra.mxu0 %v543
    %566 = vmatprep.subr.bf16.mxu0 0
    %567 = vmatpush1.bf16.msra.mxu0 %v542
    %568 = vmatprep.subr.bf16.mxu0 0
    %569 = vmatpush1.bf16.msra.mxu0 %v541
    %570 = vmatprep.subr.bf16.mxu0 0
    %571 = vmatpush1.bf16.msra.mxu0 %v540
    %572 = vmatprep.subr.bf16.mxu0 0
    %573 = vmatpush2.bf16.msra.mxu0 0
    %574 = vmatprep.subr.bf16.mxu0 0
    %575 = vmatpush2.bf16.msra.mxu0 0
    %576 = vmatprep.subr.bf16.mxu0 0
    %577 = vmatpush2.bf16.msra.mxu0 0
    %578 = vmatprep.subr.bf16.mxu0 0
    %579 = vmatpush2.bf16.msra.mxu0 0
    %580 = vmatprep.subr.bf16.mxu0 0
    %581 = vmatpush2.bf16.msra.mxu0 0
    %582 = vmatprep.subr.bf16.mxu0 0
    %583 = vmatpush2.bf16.msra.mxu0 0
    %584 = vmatprep.subr.bf16.mxu0 0
    %585 = vmatpush2.bf16.msra.mxu0 0
    %586 = vmatprep.subr.bf16.mxu0 0
    %587 = vmatpush2.bf16.msra.mxu0 0
    %588 = vmatprep.mubr.bf16.mxu0 0
    %589 = vmatmul.mubr.bf16.gmra.mxu0 %v482
    %v590 = vpop.f32.mrf.mxu0
    %v591 = vadd.f32 %v506, %v590
    %v592 = vpop.f32.mrf.mxu0
    %v593 = vpop.f32.mrf.mxu0
    %v594 = vpop.f32.mrf.mxu0
    %595 = vdwg.mxu0
    %v596 = vtanh.pop %v591
    %v597 = vpack.c.bf16 %v596, %v596
    %s598 = scalar_lea.vmem [#allocation3], 256
    %v599 = vld [vmem:[%s598] sm:$0xf]
    %v600 = vld [vmem:[%s598 + $0x4] sm:$0xf]
    %v601 = vld [vmem:[%s598 + $0x8] sm:$0xf]
    %v602 = vld [vmem:[%s598 + $0xc] sm:$0xf]
    %v603 = vld [vmem:[%s598 + $0x10] sm:$0xf]
    %v604 = vld [vmem:[%s598 + $0x14] sm:$0xf]
    %v605 = vld [vmem:[%s598 + $0x18] sm:$0xf]
    %v606 = vld [vmem:[%s598 + $0x1c] sm:$0xf]
    %v607 = vld [vmem:[%s598 + $0x20] sm:$0xf]
    %v608 = vld [vmem:[%s598 + $0x24] sm:$0xf]
    %v609 = vld [vmem:[%s598 + $0x28] sm:$0xf]
    %v610 = vld [vmem:[%s598 + $0x2c] sm:$0xf]
    %v611 = vld [vmem:[%s598 + $0x30] sm:$0xf]
    %v612 = vld [vmem:[%s598 + $0x34] sm:$0xf]
    %v613 = vld [vmem:[%s598 + $0x38] sm:$0xf]
    %v614 = vld [vmem:[%s598 + $0x3c] sm:$0xf]
    %s615 = scalar_lea.vmem %s6, 4
    %v616 = vld [vmem:[%s615] sm:$0x1]
    %v618 = vlaneseq
    %v619 = vshrl.u32 %v618, 7
    %v620 = vsub.s32 0, %v619
    %v621 = vrot.slane %v616, %v620
    %v639 = vunpack.c.l.b16 %v599
    %v640 = vunpack.c.l.b16 %v600
    %v641 = vunpack.c.l.b16 %v601
    %v642 = vunpack.c.l.b16 %v602
    %v643 = vunpack.c.l.b16 %v603
    %v644 = vunpack.c.l.b16 %v604
    %v645 = vunpack.c.l.b16 %v605
    %v646 = vunpack.c.l.b16 %v606
    %v647 = vunpack.c.l.b16 %v607
    %v648 = vunpack.c.l.b16 %v608
    %v649 = vunpack.c.l.b16 %v609
    %v650 = vunpack.c.l.b16 %v610
    %v651 = vunpack.c.l.b16 %v611
    %v652 = vunpack.c.l.b16 %v612
    %v653 = vunpack.c.l.b16 %v613
    %v654 = vunpack.c.l.b16 %v614
    %v655 = vpack.c.b16 %v640, %v639
    %v656 = vpack.c.b16 %v642, %v641
    %v657 = vpack.c.b16 %v644, %v643
    %v658 = vpack.c.b16 %v646, %v645
    %v659 = vpack.c.b16 %v648, %v647
    %v660 = vpack.c.b16 %v650, %v649
    %v661 = vpack.c.b16 %v652, %v651
    %v662 = vpack.c.b16 %v654, %v653
    %671 = vmatprep.subr.bf16.mxu0 0
    %672 = vmatpush1.bf16.msra.mxu0 %v662
    %673 = vmatprep.subr.bf16.mxu0 0
    %674 = vmatpush1.bf16.msra.mxu0 %v661
    %675 = vmatprep.subr.bf16.mxu0 0
    %676 = vmatpush1.bf16.msra.mxu0 %v660
    %677 = vmatprep.subr.bf16.mxu0 0
    %678 = vmatpush1.bf16.msra.mxu0 %v659
    %679 = vmatprep.subr.bf16.mxu0 0
    %680 = vmatpush1.bf16.msra.mxu0 %v658
    %681 = vmatprep.subr.bf16.mxu0 0
    %682 = vmatpush1.bf16.msra.mxu0 %v657
    %683 = vmatprep.subr.bf16.mxu0 0
    %684 = vmatpush1.bf16.msra.mxu0 %v656
    %685 = vmatprep.subr.bf16.mxu0 0
    %686 = vmatpush1.bf16.msra.mxu0 %v655
    %687 = vmatprep.subr.bf16.mxu0 0
    %688 = vmatpush2.bf16.msra.mxu0 0
    %689 = vmatprep.subr.bf16.mxu0 0
    %690 = vmatpush2.bf16.msra.mxu0 0
    %691 = vmatprep.subr.bf16.mxu0 0
    %692 = vmatpush2.bf16.msra.mxu0 0
    %693 = vmatprep.subr.bf16.mxu0 0
    %694 = vmatpush2.bf16.msra.mxu0 0
    %695 = vmatprep.subr.bf16.mxu0 0
    %696 = vmatpush2.bf16.msra.mxu0 0
    %697 = vmatprep.subr.bf16.mxu0 0
    %698 = vmatpush2.bf16.msra.mxu0 0
    %699 = vmatprep.subr.bf16.mxu0 0
    %700 = vmatpush2.bf16.msra.mxu0 0
    %701 = vmatprep.subr.bf16.mxu0 0
    %702 = vmatpush2.bf16.msra.mxu0 0
    %703 = vmatprep.mubr.bf16.mxu0 0
    %704 = vmatmul.mubr.bf16.gmra.mxu0 %v597
    %v705 = vpop.f32.mrf.mxu0
    %v706 = vadd.f32 %v621, %v705
    %v707 = vpop.f32.mrf.mxu0
    %v708 = vpop.f32.mrf.mxu0
    %v709 = vpop.f32.mrf.mxu0
    %710 = vdwg.mxu0
    %v711 = vtanh.pop %v706
    %v712 = vpack.c.bf16 %v711, %v711
    %s713 = scalar_lea.vmem [#allocation3], 320
    %v714 = vld [vmem:[%s713] sm:$0xf]
    %v715 = vld [vmem:[%s713 + $0x4] sm:$0xf]
    %v716 = vld [vmem:[%s713 + $0x8] sm:$0xf]
    %v717 = vld [vmem:[%s713 + $0xc] sm:$0xf]
    %v718 = vld [vmem:[%s713 + $0x10] sm:$0xf]
    %v719 = vld [vmem:[%s713 + $0x14] sm:$0xf]
    %v720 = vld [vmem:[%s713 + $0x18] sm:$0xf]
    %v721 = vld [vmem:[%s713 + $0x1c] sm:$0xf]
    %v722 = vld [vmem:[%s713 + $0x20] sm:$0xf]
    %v723 = vld [vmem:[%s713 + $0x24] sm:$0xf]
    %v724 = vld [vmem:[%s713 + $0x28] sm:$0xf]
    %v725 = vld [vmem:[%s713 + $0x2c] sm:$0xf]
    %v726 = vld [vmem:[%s713 + $0x30] sm:$0xf]
    %v727 = vld [vmem:[%s713 + $0x34] sm:$0xf]
    %v728 = vld [vmem:[%s713 + $0x38] sm:$0xf]
    %v729 = vld [vmem:[%s713 + $0x3c] sm:$0xf]
    %s730 = scalar_lea.vmem %s6, 5
    %v731 = vld [vmem:[%s730] sm:$0x1]
    %v733 = vlaneseq
    %v734 = vshrl.u32 %v733, 7
    %v735 = vsub.s32 0, %v734
    %v736 = vrot.slane %v731, %v735
    %v754 = vunpack.c.l.b16 %v714
    %v755 = vunpack.c.l.b16 %v715
    %v756 = vunpack.c.l.b16 %v716
    %v757 = vunpack.c.l.b16 %v717
    %v758 = vunpack.c.l.b16 %v718
    %v759 = vunpack.c.l.b16 %v719
    %v760 = vunpack.c.l.b16 %v720
    %v761 = vunpack.c.l.b16 %v721
    %v762 = vunpack.c.l.b16 %v722
    %v763 = vunpack.c.l.b16 %v723
    %v764 = vunpack.c.l.b16 %v724
    %v765 = vunpack.c.l.b16 %v725
    %v766 = vunpack.c.l.b16 %v726
    %v767 = vunpack.c.l.b16 %v727
    %v768 = vunpack.c.l.b16 %v728
    %v769 = vunpack.c.l.b16 %v729
    %v770 = vpack.c.b16 %v755, %v754
    %v771 = vpack.c.b16 %v757, %v756
    %v772 = vpack.c.b16 %v759, %v758
    %v773 = vpack.c.b16 %v761, %v760
    %v774 = vpack.c.b16 %v763, %v762
    %v775 = vpack.c.b16 %v765, %v764
    %v776 = vpack.c.b16 %v767, %v766
    %v777 = vpack.c.b16 %v769, %v768
    %786 = vmatprep.subr.bf16.mxu0 0
    %787 = vmatpush1.bf16.msra.mxu0 %v777
    %788 = vmatprep.subr.bf16.mxu0 0
    %789 = vmatpush1.bf16.msra.mxu0 %v776
    %790 = vmatprep.subr.bf16.mxu0 0
    %791 = vmatpush1.bf16.msra.mxu0 %v775
    %792 = vmatprep.subr.bf16.mxu0 0
    %793 = vmatpush1.bf16.msra.mxu0 %v774
    %794 = vmatprep.subr.bf16.mxu0 0
    %795 = vmatpush1.bf16.msra.mxu0 %v773
    %796 = vmatprep.subr.bf16.mxu0 0
    %797 = vmatpush1.bf16.msra.mxu0 %v772
    %798 = vmatprep.subr.bf16.mxu0 0
    %799 = vmatpush1.bf16.msra.mxu0 %v771
    %800 = vmatprep.subr.bf16.mxu0 0
    %801 = vmatpush1.bf16.msra.mxu0 %v770
    %802 = vmatprep.subr.bf16.mxu0 0
    %803 = vmatpush2.bf16.msra.mxu0 0
    %804 = vmatprep.subr.bf16.mxu0 0
    %805 = vmatpush2.bf16.msra.mxu0 0
    %806 = vmatprep.subr.bf16.mxu0 0
    %807 = vmatpush2.bf16.msra.mxu0 0
    %808 = vmatprep.subr.bf16.mxu0 0
    %809 = vmatpush2.bf16.msra.mxu0 0
    %810 = vmatprep.subr.bf16.mxu0 0
    %811 = vmatpush2.bf16.msra.mxu0 0
    %812 = vmatprep.subr.bf16.mxu0 0
    %813 = vmatpush2.bf16.msra.mxu0 0
    %814 = vmatprep.subr.bf16.mxu0 0
    %815 = vmatpush2.bf16.msra.mxu0 0
    %816 = vmatprep.subr.bf16.mxu0 0
    %817 = vmatpush2.bf16.msra.mxu0 0
    %818 = vmatprep.mubr.bf16.mxu0 0
    %819 = vmatmul.mubr.bf16.gmra.mxu0 %v712
    %v820 = vpop.f32.mrf.mxu0
    %v821 = vadd.f32 %v736, %v820
    %v822 = vpop.f32.mrf.mxu0
    %v823 = vpop.f32.mrf.mxu0
    %v824 = vpop.f32.mrf.mxu0
    %825 = vdwg.mxu0
    %v826 = vtanh.pop %v821
    %v827 = vpack.c.bf16 %v826, %v826
    %v828 = vld [vmem:[%s7] sm:$0xf]
    %v829 = vld [vmem:[%s7 + $0x4] sm:$0xf]
    %v830 = vld [vmem:[%s7 + $0x8] sm:$0xf]
    %v831 = vld [vmem:[%s7 + $0xc] sm:$0xf]
    %v832 = vld [vmem:[%s7 + $0x10] sm:$0xf]
    %v833 = vld [vmem:[%s7 + $0x14] sm:$0xf]
    %v834 = vld [vmem:[%s7 + $0x18] sm:$0xf]
    %v835 = vld [vmem:[%s7 + $0x1c] sm:$0xf]
    %v836 = vld [vmem:[%s7 + $0x20] sm:$0xf]
    %v837 = vld [vmem:[%s7 + $0x24] sm:$0xf]
    %v838 = vld [vmem:[%s7 + $0x28] sm:$0xf]
    %v839 = vld [vmem:[%s7 + $0x2c] sm:$0xf]
    %v840 = vld [vmem:[%s7 + $0x30] sm:$0xf]
    %v841 = vld [vmem:[%s7 + $0x34] sm:$0xf]
    %v842 = vld [vmem:[%s7 + $0x38] sm:$0xf]
    %v843 = vld [vmem:[%s7 + $0x3c] sm:$0xf]
    %v844 = vld [vmem:[%s8] sm:$0x1]
    %v846 = vlaneseq
    %v847 = vshrl.u32 %v846, 7
    %v848 = vsub.s32 0, %v847
    %v849 = vrot.slane %v844, %v848
    %v867 = vunpack.c.l.b16 %v828
    %v868 = vunpack.c.l.b16 %v829
    %v869 = vunpack.c.l.b16 %v830
    %v870 = vunpack.c.l.b16 %v831
    %v871 = vunpack.c.l.b16 %v832
    %v872 = vunpack.c.l.b16 %v833
    %v873 = vunpack.c.l.b16 %v834
    %v874 = vunpack.c.l.b16 %v835
    %v875 = vunpack.c.l.b16 %v836
    %v876 = vunpack.c.l.b16 %v837
    %v877 = vunpack.c.l.b16 %v838
    %v878 = vunpack.c.l.b16 %v839
    %v879 = vunpack.c.l.b16 %v840
    %v880 = vunpack.c.l.b16 %v841
    %v881 = vunpack.c.l.b16 %v842
    %v882 = vunpack.c.l.b16 %v843
    %v883 = vpack.c.b16 %v868, %v867
    %v884 = vpack.c.b16 %v870, %v869
    %v885 = vpack.c.b16 %v872, %v871
    %v886 = vpack.c.b16 %v874, %v873
    %v887 = vpack.c.b16 %v876, %v875
    %v888 = vpack.c.b16 %v878, %v877
    %v889 = vpack.c.b16 %v880, %v879
    %v890 = vpack.c.b16 %v882, %v881
    %899 = vmatprep.subr.bf16.mxu0 0
    %900 = vmatpush1.bf16.msra.mxu0 %v890
    %901 = vmatprep.subr.bf16.mxu0 0
    %902 = vmatpush1.bf16.msra.mxu0 %v889
    %903 = vmatprep.subr.bf16.mxu0 0
    %904 = vmatpush1.bf16.msra.mxu0 %v888
    %905 = vmatprep.subr.bf16.mxu0 0
    %906 = vmatpush1.bf16.msra.mxu0 %v887
    %907 = vmatprep.subr.bf16.mxu0 0
    %908 = vmatpush1.bf16.msra.mxu0 %v886
    %909 = vmatprep.subr.bf16.mxu0 0
    %910 = vmatpush1.bf16.msra.mxu0 %v885
    %911 = vmatprep.subr.bf16.mxu0 0
    %912 = vmatpush1.bf16.msra.mxu0 %v884
    %913 = vmatprep.subr.bf16.mxu0 0
    %914 = vmatpush1.bf16.msra.mxu0 %v883
    %915 = vmatprep.subr.bf16.mxu0 0
    %916 = vmatpush2.bf16.msra.mxu0 0
    %917 = vmatprep.subr.bf16.mxu0 0
    %918 = vmatpush2.bf16.msra.mxu0 0
    %919 = vmatprep.subr.bf16.mxu0 0
    %920 = vmatpush2.bf16.msra.mxu0 0
    %921 = vmatprep.subr.bf16.mxu0 0
    %922 = vmatpush2.bf16.msra.mxu0 0
    %923 = vmatprep.subr.bf16.mxu0 0
    %924 = vmatpush2.bf16.msra.mxu0 0
    %925 = vmatprep.subr.bf16.mxu0 0
    %926 = vmatpush2.bf16.msra.mxu0 0
    %927 = vmatprep.subr.bf16.mxu0 0
    %928 = vmatpush2.bf16.msra.mxu0 0
    %929 = vmatprep.subr.bf16.mxu0 0
    %930 = vmatpush2.bf16.msra.mxu0 0
    %931 = vmatprep.mubr.bf16.mxu0 0
    %932 = vmatmul.mubr.bf16.gmra.mxu0 %v827
    %v933 = vpop.f32.mrf.mxu0
    %v934 = vadd.f32 %v849, %v933
    %v935 = vpop.f32.mrf.mxu0
    %v936 = vpop.f32.mrf.mxu0
    %v937 = vpop.f32.mrf.mxu0
    %938 = vdwg.mxu0
    %939 = vst.msk [vmem:[%s9] sm:$0xff] %vm94, %v934
    // Predicated region
    $region42: #{odefunc_forward.1} parent=1 // pred_check
      _
    $region43: #{odefunc_forward.1} parent=1 // pred_check_branch
      %941 = sbr.rel (0) target = $region45
    $region44: #{odefunc_forward.1} parent=1 // pred_region
      _
    $region45: #{odefunc_forward.1} parent=1 // pred_fallthru
      _
    // Predicated region
    $region46: #{odefunc_forward.1} parent=1 // pred_check
      _
    $region47: #{odefunc_forward.1} parent=1 // pred_check_branch
      %943 = sbr.rel (0) target = $region49
    $region48: #{odefunc_forward.1} parent=1 // pred_region
      _
    $region49: #{odefunc_forward.1} parent=1 // pred_fallthru
      _
    %944 = vsyncpa [#allocation4], 1

</llo_original>
